<compile_context>
chip_gen: v5e
topology: v5e:2x2
jax: 0.10.0
libtpu: 0.0.40
codegen_flags: <defaults>
</compile_context>

<pallas_src>
import jax
import jax.numpy as jnp
from jax.experimental import pallas as pl
from jax.experimental.pallas import tpu as pltpu

BN_EPS = 1e-5


def _round_up(x, m):
    return ((x + m - 1) // m) * m


def encoder_layer(adj, x, w, b, gamma, beta):
    """adj: (N, N) dense 0/1 adjacency (row i = in-neighbors of node i), x: (N, Fin),
    w: (Fout, Fin), b/gamma/beta: (Fout,).  Returns (N, Fout) float32."""
    n, f_in = x.shape
    f_out = w.shape[0]

    # ---- tile sizes (multiples of (8,128)/(32,128); v7x-safe VMEM budget) ----
    m_req = _round_up(n, 8)
    if m_req <= 1024:
        tm = m_req                                    # one row tile; block == full padded array
    else:
        # split rows across >=2 tiles (v7x megacore) and cap at 2048 (v7x 64 MiB VMEM);
        # multiple of 32 keeps the int8 A tile on its native sublane tiling.
        tm = min(2048, _round_up((m_req + 1) // 2, 32))
    tk = min(2048, _round_up(n, 128))                 # neighbor (reduction) tile of A
    m_pad = _round_up(n, tm)
    k_pad = _round_up(n, tk)
    fout_pad = _round_up(f_out, 128)                  # lane-dense output width
    grid_m = m_pad // tm
    grid_k = k_pad // tk

    # ---- fold the Linear weight once: xw = x @ W^T (bf16 MXU operands, f32 accumulation) ----
    xw = jnp.dot(x.astype(jnp.bfloat16), w.T.astype(jnp.bfloat16),
                 preferred_element_type=jnp.float32).astype(jnp.bfloat16)

    # ---- pad operands: int8 A (0/1 lossless), bf16 xw, f32 params ----
    a_p = jnp.zeros((m_pad, k_pad), jnp.int8).at[:n, :n].set(adj.astype(jnp.int8))
    xw_p = jnp.zeros((k_pad, fout_pad), jnp.bfloat16).at[:n, :f_out].set(xw)
    b_p = jnp.zeros((1, fout_pad), jnp.float32).at[0, :f_out].set(b.astype(jnp.float32))

    # ---------- pass 1: aggregation + fused bias/ReLU + BatchNorm partial sums ----------
    def agg_bias_relu_kernel(a_ref, xw_ref, b_ref, z_ref, stats_ref, acc_ref):
        # program_id / num_programs hoisted to the top level (not legal inside pl.when bodies
        # on the interpret fallback path).
        row_i = pl.program_id(0)
        k = pl.program_id(1)
        nk = pl.num_programs(1)

        @pl.when(k == 0)
        def _():
            acc_ref[...] = jnp.zeros_like(acc_ref)

        # graph aggregation: acc[rows, :] += A[rows, k_tile] @ xw[k_tile, :]
        # A is int8 0/1 in HBM; upcast to bf16 just before the MXU (f32 accumulation).
        acc_ref[...] += jnp.dot(a_ref[...].astype(jnp.bfloat16), xw_ref[...],
                                preferred_element_type=jnp.float32)

        @pl.when(k == nk - 1)
        def _():
            z = jnp.maximum(acc_ref[...] + b_ref[...], 0.0)   # fused bias + ReLU
            zb = z.astype(jnp.bfloat16)
            z_ref[...] = zb
            zf = zb.astype(jnp.float32)   # stats from exactly the values pass 2 will read

            def write_stats(zm):
                s1 = jnp.sum(zm, axis=0, keepdims=True)        # (1, fout_pad)
                s2 = jnp.sum(zm * zm, axis=0, keepdims=True)   # (1, fout_pad)
                stats_ref[...] = jnp.concatenate([s1, s2], axis=0)[None]

            if m_pad == n:                 # static: no padded rows anywhere -> never mask
                write_stats(zf)
            else:
                is_edge = row_i == grid_m - 1

                @pl.when(is_edge)          # only the edge tile pays the iota/compare/select
                def _():
                    rows = (jax.lax.broadcasted_iota(jnp.int32, zf.shape, 0) + row_i * tm)
                    write_stats(jnp.where(rows < n, zf, 0.0))

                @pl.when(jnp.logical_not(is_edge))
                def _():
                    write_stats(zf)

    z_pad, stats = pl.pallas_call(
        agg_bias_relu_kernel,
        out_shape=(
            jax.ShapeDtypeStruct((m_pad, fout_pad), jnp.bfloat16),     # z = relu(A x W^T + b)
            jax.ShapeDtypeStruct((grid_m, 2, fout_pad), jnp.float32),  # per-tile [sum, sumsq]
        ),
        grid_spec=pltpu.PrefetchScalarGridSpec(
            num_scalar_prefetch=0,
            grid=(grid_m, grid_k),
            in_specs=[
                pl.BlockSpec((tm, tk), lambda i, k: (i, k)),            # A tile (int8)
                pl.BlockSpec((tk, fout_pad), lambda i, k: (k, 0)),      # xw tile (bf16)
                pl.BlockSpec((1, fout_pad), lambda i, k: (0, 0)),       # bias (small, resident)
            ],
            out_specs=[
                pl.BlockSpec((tm, fout_pad), lambda i, k: (i, 0)),
                pl.BlockSpec((1, 2, fout_pad), lambda i, k: (i, 0, 0)),
            ],
            scratch_shapes=[pltpu.VMEM((tm, fout_pad), jnp.float32)],   # A@xw accumulator
        ),
        compiler_params=pltpu.CompilerParams(
            dimension_semantics=("parallel", "arbitrary"),
            vmem_limit_bytes=48 * 1024 * 1024,   # <= 48 MiB: safe on v7x's 64 MiB VMEM
        ),
        cost_estimate=pl.CostEstimate(
            flops=2 * m_pad * k_pad * fout_pad,
            transcendentals=0,
            bytes_accessed=int(a_p.size + 2 * xw_p.size * grid_m
                               + 2 * m_pad * fout_pad + 4 * grid_m * 2 * fout_pad),
        ),
    )(a_p, xw_p, b_p)

    # ---- tiny host-side reduction: batch mean / inv_std over ALL N rows, folded BN affine ----
    # TODO(synk): PyTorch eval()-mode BatchNorm1d would use running_mean/running_var; batch
    # statistics (training-mode normalization) are used here, as in the original kernel.
    col_sum = jnp.sum(stats[:, 0, :], axis=0)
    col_sumsq = jnp.sum(stats[:, 1, :], axis=0)
    mean = col_sum / n
    var = jnp.maximum(col_sumsq / n - mean * mean, 0.0)   # biased variance (E[x^2]-E[x]^2)
    inv_std = jax.lax.rsqrt(var + BN_EPS)
    g_p = jnp.zeros((fout_pad,), jnp.float32).at[:f_out].set(gamma.astype(jnp.float32))
    be_p = jnp.zeros((fout_pad,), jnp.float32).at[:f_out].set(beta.astype(jnp.float32))
    scale = (g_p * inv_std).reshape(1, fout_pad)          # gamma * inv_std
    shift = (be_p - mean * g_p * inv_std).reshape(1, fout_pad)   # beta - mean*scale

    # ---------- pass 2: y = z*scale + shift (lane-dense, memory-bound, bf16 z input) ----------
    # For small N this elementwise op could be left to plain XLA so it fuses with the final
    # slice and downstream consumers; kept in Pallas here so the whole layer stays in-kernel.
    def bn_affine_kernel(z_ref, scale_ref, shift_ref, o_ref):
        o_ref[...] = z_ref[...].astype(jnp.float32) * scale_ref[...] + shift_ref[...]
        # TODO(synk): training-mode dropout would apply a pltpu.prng_random_bits mask here.

    out_pad = pl.pallas_call(
        bn_affine_kernel,
        out_shape=jax.ShapeDtypeStruct((m_pad, fout_pad), jnp.float32),
        grid_spec=pltpu.PrefetchScalarGridSpec(
            num_scalar_prefetch=0,
            grid=(grid_m,),
            in_specs=[
                pl.BlockSpec((tm, fout_pad), lambda i: (i, 0)),
                pl.BlockSpec((1, fout_pad), lambda i: (0, 0)),
                pl.BlockSpec((1, fout_pad), lambda i: (0, 0)),
            ],
            out_specs=pl.BlockSpec((tm, fout_pad), lambda i: (i, 0)),
        ),
        compiler_params=pltpu.CompilerParams(dimension_semantics=("parallel",)),
    )(z_pad, scale, shift)

    return out_pad[:n, :f_out]


def encoder_layer_ref(adj, x, w, b, gamma, beta, match_kernel=False):
    """Pure-JAX reference. match_kernel=True mirrors the kernel's bf16 operands / bf16 z store."""
    if match_kernel:
        xw = jnp.dot(x.astype(jnp.bfloat16), w.T.astype(jnp.bfloat16),
                     preferred_element_type=jnp.float32).astype(jnp.bfloat16)
        h = jnp.dot(adj.astype(jnp.bfloat16), xw, preferred_element_type=jnp.float32)
        z = jnp.maximum(h + b, 0.0).astype(jnp.bfloat16).astype(jnp.float32)
    else:
        h = jnp.dot(adj, x)
        z = jnp.maximum(jnp.dot(h, w.T) + b, 0.0)
    mean = jnp.mean(z, axis=0, keepdims=True)
    var = jnp.maximum(jnp.mean(z * z, axis=0, keepdims=True) - mean * mean, 0.0)
    inv_std = jax.lax.rsqrt(var + BN_EPS)
    return z * (gamma * inv_std) + (beta - mean * gamma * inv_std)


if __name__ == "__main__":
    key = jax.random.PRNGKey(0)
    k_adj, k_x, k_w, k_b = jax.random.split(key, 4)

    N, F_IN, F_OUT = 8, 16, 32  # small synthetic graph: 8 nodes

    # deterministic random adjacency (directed, with self-loops), dense 0/1
    adj = (jax.random.uniform(k_adj, (N, N)) < 0.4).astype(jnp.float32)
    adj = jnp.maximum(adj, jnp.eye(N, dtype=jnp.float32))

    x = jax.random.normal(k_x, (N, F_IN), dtype=jnp.float32)

    # deterministic parameter init (Linear weight/bias, BatchNorm affine)
    w = jax.random.normal(k_w, (F_OUT, F_IN), dtype=jnp.float32) * 0.1
    b = jax.random.normal(k_b, (F_OUT,), dtype=jnp.float32) * 0.1
    gamma = jnp.ones((F_OUT,), dtype=jnp.float32)
    beta = jnp.zeros((F_OUT,), dtype=jnp.float32)

    out = jax.block_until_ready(encoder_layer(adj, x, w, b, gamma, beta))
    assert out.shape == (N, F_OUT)

    # tight check against a precision-matched reference (same bf16 operands / bf16 z)
    ref_matched = encoder_layer_ref(adj, x, w, b, gamma, beta, match_kernel=True)
    assert jnp.allclose(out, ref_matched, atol=2e-3, rtol=2e-3), \
        "mismatch vs bf16-matched reference"

    # sanity check against the exact f32 module semantics (bf16 operands => looser tolerance)
    ref_f32 = encoder_layer_ref(adj, x, w, b, gamma, beta, match_kernel=False)
    assert jnp.allclose(out, ref_f32, atol=1e-1, rtol=1e-1), "mismatch vs f32 reference"

    print("KERNEL_OK")
</pallas_src>

<mosaic_0001>
module attributes {stable_mosaic.version = 11 : i64} {
  func.func @agg_bias_relu_kernel(%arg0: i32, %arg1: i32, %arg2: memref<8x128xi8, #tpu.memory_space<vmem>>, %arg3: memref<128x128xbf16, #tpu.memory_space<vmem>>, %arg4: memref<1x128xf32, #tpu.memory_space<vmem>>, %arg5: memref<8x128xbf16, #tpu.memory_space<vmem>>, %arg6: memref<1x2x128xf32, #tpu.memory_space<vmem>>, %arg7: memref<8x128xf32, #tpu.memory_space<vmem>>) attributes {dimension_semantics = [#tpu.dimension_semantics<parallel>, #tpu.dimension_semantics<arbitrary>], iteration_bounds = array<i64: 1, 1>, scalar_prefetch = 0 : i64, scratch_operands = 1 : i64, tpu.core_type = #tpu.core_type<tc>, window_params = [{transform_indices = @transform_0, window_bounds = array<i64: 8, 128>}, {transform_indices = @transform_1, window_bounds = array<i64: 128, 128>}, {pipeline_mode = #tpu.pipeline_mode<synchronous>, transform_indices = @transform_2, window_bounds = array<i64: 1, 128>}, {transform_indices = @transform_3, window_bounds = array<i64: 8, 128>}, {transform_indices = @transform_4, window_bounds = array<i64: 1, 2, 128>}]} {
    %c0_i32 = arith.constant 0 : i32
    %0 = arith.cmpi eq, %arg1, %c0_i32 : i32
    %1 = arith.extui %0 : i1 to i32
    %c0_i32_0 = arith.constant 0 : i32
    %2 = arith.cmpi ne, %1, %c0_i32_0 : i32
    scf.if %2 {
      %cst_10 = arith.constant 0.000000e+00 : f32
      %13 = vector.broadcast %cst_10 : f32 to vector<8x128xf32>
      %c0_11 = arith.constant 0 : index
      %c0_12 = arith.constant 0 : index
      %14 = vector.load %arg7[%c0_11, %c0_12] : memref<8x128xf32, #tpu.memory_space<vmem>>, vector<8x128xf32>
      tpu.vector_store %arg7[%c0_11, %c0_12], %13 {strides = array<i32>} : memref<8x128xf32, #tpu.memory_space<vmem>>, vector<8x128xf32>,
    } else {
    }
    %c0 = arith.constant 0 : index
    %c0_1 = arith.constant 0 : index
    %3 = vector.load %arg7[%c0, %c0_1] : memref<8x128xf32, #tpu.memory_space<vmem>>, vector<8x128xf32>
    %c0_2 = arith.constant 0 : index
    %c0_3 = arith.constant 0 : index
    %4 = vector.load %arg2[%c0_2, %c0_3] : memref<8x128xi8, #tpu.memory_space<vmem>>, vector<8x128xi8>
    %5 = arith.sitofp %4 : vector<8x128xi8> to vector<8x128xbf16>
    %c0_4 = arith.constant 0 : index
    %c0_5 = arith.constant 0 : index
    %6 = vector.load %arg3[%c0_4, %c0_5] : memref<128x128xbf16, #tpu.memory_space<vmem>>, vector<128x128xbf16>
    %cst = arith.constant dense<0.000000e+00> : vector<8x128xf32>
    %7 = tpu.matmul %5, %6, %cst {dimension_numbers = #tpu.dot_dimension_numbers<[1], [0], [0], [1], [0, 0, 1, 1], [], []>} : vector<8x128xbf16>, vector<128x128xbf16>, vector<8x128xf32> -> vector<8x128xf32>
    %8 = arith.addf %3, %7 : vector<8x128xf32>
    %c0_6 = arith.constant 0 : index
    %c0_7 = arith.constant 0 : index
    %9 = vector.load %arg7[%c0_6, %c0_7] : memref<8x128xf32, #tpu.memory_space<vmem>>, vector<8x128xf32>
    tpu.vector_store %arg7[%c0_6, %c0_7], %8 {strides = array<i32>} : memref<8x128xf32, #tpu.memory_space<vmem>>, vector<8x128xf32>,
    %c0_i32_8 = arith.constant 0 : i32
    %10 = arith.cmpi eq, %arg1, %c0_i32_8 : i32
    %11 = arith.extui %10 : i1 to i32
    %c0_i32_9 = arith.constant 0 : i32
    %12 = arith.cmpi ne, %11, %c0_i32_9 : i32
    scf.if %12 {
      %c0_10 = arith.constant 0 : index
      %c0_11 = arith.constant 0 : index
      %13 = vector.load %arg7[%c0_10, %c0_11] : memref<8x128xf32, #tpu.memory_space<vmem>>, vector<8x128xf32>
      %c0_12 = arith.constant 0 : index
      %c0_13 = arith.constant 0 : index
      %14 = vector.load %arg4[%c0_12, %c0_13] : memref<1x128xf32, #tpu.memory_space<vmem>>, vector<1x128xf32>
      %15 = vector.broadcast %14 : vector<1x128xf32> to vector<8x128xf32>
      %16 = arith.addf %13, %15 : vector<8x128xf32>
      %cst_14 = arith.constant 0.000000e+00 : f32
      %17 = vector.broadcast %cst_14 : f32 to vector<8x128xf32>
      %18 = arith.maximumf %16, %17 : vector<8x128xf32>
      %19 = arith.truncf %18 : vector<8x128xf32> to vector<8x128xbf16>
      %c0_15 = arith.constant 0 : index
      %c0_16 = arith.constant 0 : index
      %20 = vector.load %arg5[%c0_15, %c0_16] : memref<8x128xbf16, #tpu.memory_space<vmem>>, vector<8x128xbf16>
      tpu.vector_store %arg5[%c0_15, %c0_16], %19 {strides = array<i32>} : memref<8x128xbf16, #tpu.memory_space<vmem>>, vector<8x128xbf16>,
      %21 = arith.extf %19 : vector<8x128xbf16> to vector<8x128xf32>
      %cst_17 = arith.constant dense<0.000000e+00> : vector<128xf32>
      %22 = vector.multi_reduction <add>, %21, %cst_17 [0] : vector<8x128xf32> to vector<128xf32>
      %23 = vector.shape_cast %22 : vector<128xf32> to vector<1x128xf32>
      %24 = arith.mulf %21, %21 : vector<8x128xf32>
      %cst_18 = arith.constant dense<0.000000e+00> : vector<128xf32>
      %25 = vector.multi_reduction <add>, %24, %cst_18 [0] : vector<8x128xf32> to vector<128xf32>
      %26 = vector.shape_cast %25 : vector<128xf32> to vector<1x128xf32>
      %27 = tpu.concatenate %23, %26 in 0 : vector<1x128xf32>, vector<1x128xf32> -> vector<2x128xf32>
      %28 = vector.shape_cast %27 : vector<2x128xf32> to vector<1x2x128xf32>
      %c0_19 = arith.constant 0 : index
      %c0_20 = arith.constant 0 : index
      %c0_21 = arith.constant 0 : index
      %29 = vector.load %arg6[%c0_19, %c0_20, %c0_21] : memref<1x2x128xf32, #tpu.memory_space<vmem>>, vector<1x2x128xf32>
      tpu.vector_store %arg6[%c0_19, %c0_20, %c0_21], %28 {strides = array<i32>} : memref<1x2x128xf32, #tpu.memory_space<vmem>>, vector<1x2x128xf32>,
    } else {
    }
    return
  }
  func.func @transform_0(%arg0: i32, %arg1: i32) -> (i32, i32) {
    %c0_i32 = arith.constant 0 : i32
    return %arg0, %arg1 : i32, i32
  }
  func.func @transform_1(%arg0: i32, %arg1: i32) -> (i32, i32) {
    %c0_i32 = arith.constant 0 : i32
    %c0_i32_0 = arith.constant 0 : i32
    return %arg1, %c0_i32 : i32, i32
  }
  func.func @transform_2(%arg0: i32, %arg1: i32) -> (i32, i32) {
    %c0_i32 = arith.constant 0 : i32
    %c0_i32_0 = arith.constant 0 : i32
    %c0_i32_1 = arith.constant 0 : i32
    return %c0_i32, %c0_i32_0 : i32, i32
  }
  func.func @transform_3(%arg0: i32, %arg1: i32) -> (i32, i32) {
    %c0_i32 = arith.constant 0 : i32
    %c0_i32_0 = arith.constant 0 : i32
    return %arg0, %c0_i32 : i32, i32
  }
  func.func @transform_4(%arg0: i32, %arg1: i32) -> (i32, i32, i32) {
    %c0_i32 = arith.constant 0 : i32
    %c0_i32_0 = arith.constant 0 : i32
    %c0_i32_1 = arith.constant 0 : i32
    return %arg0, %c0_i32, %c0_i32_0 : i32, i32, i32
  }
}

</mosaic_0001>

<llo_original>
// kernel: tpu_custom_call.1
$region0: #{tpu_custom_call.1}
  #allocation0 [shape = 'u32[]', space=smem, size = 0x4, offset = 0x4, fixed_abs, tag = 'smem constant byte address 0x4 - core index']
  #allocation1 [shape = 'u32[72,128]{1,0:T(1,128)}', space=vmem, size = 0x9000, scoped, tag = 'internal scratch']
  #allocation2 [shape = 'f32[8,128]{1,0:T(8,128)}', space=vmem, size = 0x1000, scoped, tag = 'scratch operand']
  %s0 = inlined_call_operand.hbm [shape: s8[8,128], index: 0, kind: input, shape index: {}]
  %s1 = inlined_call_operand.hbm [shape: bf16[128,128], index: 1, kind: input, shape index: {}]
  %s2 = inlined_call_operand.vmem [shape: f32[1,128], index: 2, kind: input, shape index: {}]
  %s3 = inlined_call_operand.hbm [shape: bf16[8,128], index: 3, kind: output, shape index: {0}]
  %s4 = inlined_call_operand.hbm [shape: f32[1,2,128], index: 4, kind: output, shape index: {1}]
  %5 = xla_tuple %s3, %s4
  %s6 = sld [smem:[#allocation0]]
  $region46: #{tpu_custom_call.1} parent=0
    _
  %s8 = ssub.s32 1, %s6
  %s9 = scalar_select 0, %s8, %s6
  $region1: #{tpu_custom_call.1} parent=0
    #allocation3 [shape = 'u8[1024]{0}', space=vmem, size = 0x400, scoped, tag = 'input window, operand 0, single buffered']
    #allocation4 [shape = 's32[1]{0}', space=sflag, size = 0x4, scoped, tag = 'scoped memory for tpu_custom_call.1']
    #allocation5 [shape = 's32[1]{0}', space=sflag, size = 0x4, scoped, tag = 'scoped memory for tpu_custom_call.1']
    #allocation6 [shape = 'u8[32768]{0}', space=vmem, size = 0x8000, scoped, tag = 'input window, operand 1, single buffered']
    #allocation7 [shape = 's32[1]{0}', space=sflag, size = 0x4, scoped, tag = 'scoped memory for tpu_custom_call.1']
    #allocation8 [shape = 'u8[2048]{0}', space=vmem, size = 0x800, scoped, tag = 'output window, operand 0, single buffered']
    #allocation9 [shape = 'u8[1024]{0}', space=vmem, size = 0x400, scoped, tag = 'output window, operand 1, single buffered']
    #allocation10 [shape = 's32[1]{0}', space=sflag, size = 0x4, scoped, tag = 'scoped memory for tpu_custom_call.1']
    %10 = vsyncpa [#allocation4], 0
    %11 = vsyncpa [#allocation7], 0
    %12 = vsyncpa [#allocation5], 0
    %13 = vsyncpa [#allocation10], 0
    // Predicated region
    $region2: #{tpu_custom_call.1} parent=1 // pred_check
      _
    $region3: #{tpu_custom_call.1} parent=1 // pred_check_branch
      %15 = sbr.rel (0) target = $region5
    $region4: #{tpu_custom_call.1} parent=1 // pred_region
      %17 = vsyncadd [#allocation4], 0
      %s19 = sshll.u32 %s0, 4
      %s20 = int_to_ptr.hbm [resolvable:$true] %s19
      %s21 = sshll.u32 [#allocation3], 4
      %s22 = int_to_ptr.vmem [resolvable:$true] %s21
      %24 = dma.hbm_to_vmem [thread:$0]  %s20, 32, %s22, [#allocation4]
    $region5: #{tpu_custom_call.1} parent=1 // pred_fallthru
      _
    // Predicated region
    $region6: #{tpu_custom_call.1} parent=1 // pred_check
      _
    $region7: #{tpu_custom_call.1} parent=1 // pred_check_branch
      %26 = sbr.rel (0) target = $region9
    $region8: #{tpu_custom_call.1} parent=1 // pred_region
      %28 = vsyncadd [#allocation7], 0
      %s29 = sshll.u32 %s1, 4
      %s30 = int_to_ptr.hbm [resolvable:$true] %s29
      %s31 = sshll.u32 [#allocation6], 4
      %s32 = int_to_ptr.vmem [resolvable:$true] %s31
      %37 = dma.hbm_to_vmem [thread:$0]  %s30, 1024, %s32, [#allocation7], 64, 64, 4
    $region9: #{tpu_custom_call.1} parent=1 // pred_fallthru
      _
    // Predicated region
    $region10: #{tpu_custom_call.1} parent=1 // pred_check
      _
    $region11: #{tpu_custom_call.1} parent=1 // pred_check_branch
      %39 = sbr.rel (0) target = $region13
    $region12: #{tpu_custom_call.1} parent=1 // pred_region
      _
    $region13: #{tpu_custom_call.1} parent=1 // pred_fallthru
      _
    // Predicated region
    $region14: #{tpu_custom_call.1} parent=1 // pred_check
      _
    $region15: #{tpu_custom_call.1} parent=1 // pred_check_branch
      %41 = sbr.rel (0) target = $region17
    $region16: #{tpu_custom_call.1} parent=1 // pred_region
      %43 = dma.done [#allocation4], 32
    $region17: #{tpu_custom_call.1} parent=1 // pred_fallthru
      _
    // Predicated region
    $region18: #{tpu_custom_call.1} parent=1 // pred_check
      _
    $region19: #{tpu_custom_call.1} parent=1 // pred_check_branch
      %45 = sbr.rel (0) target = $region21
    $region20: #{tpu_custom_call.1} parent=1 // pred_region
      %47 = dma.done [#allocation7], 1024
    $region21: #{tpu_custom_call.1} parent=1 // pred_fallthru
      _
    %p48 = scmp.eq.s32.totalorder 0, 0
    // Predicated region
    $region22: #{tpu_custom_call.1} parent=1 // pred_check
      %p49 = pneg %p48
    $region23: #{tpu_custom_call.1} parent=1 // pred_check_branch
      %51 = sbr.rel (%p49) target = $region25
    $region24: #{tpu_custom_call.1} parent=1 // pred_region
      %52 = vst [vmem:[#allocation2] sm:$0xff] 0.0
    $region25: #{tpu_custom_call.1} parent=1 // pred_fallthru
      _
    %v53 = vld [vmem:[#allocation2] sm:$0xff]
    %v54 = vld [vmem:[#allocation3] sm:$0x3]
    %v55 = vunpack.c.0.s8 %v54
    %v56 = vcvt.s32.f32 %v55
    %v57 = vpack.c.bf16 %v56, %v56
    %v58 = vld [vmem:[#allocation6] sm:$0xf]
    %v59 = vld [vmem:[#allocation6 + $0x4] sm:$0xf]
    %v60 = vld [vmem:[#allocation6 + $0x8] sm:$0xf]
    %v61 = vld [vmem:[#allocation6 + $0xc] sm:$0xf]
    %v62 = vld [vmem:[#allocation6 + $0x10] sm:$0xf]
    %v63 = vld [vmem:[#allocation6 + $0x14] sm:$0xf]
    %v64 = vld [vmem:[#allocation6 + $0x18] sm:$0xf]
    %v65 = vld [vmem:[#allocation6 + $0x1c] sm:$0xf]
    %v66 = vld [vmem:[#allocation6 + $0x20] sm:$0xf]
    %v67 = vld [vmem:[#allocation6 + $0x24] sm:$0xf]
    %v68 = vld [vmem:[#allocation6 + $0x28] sm:$0xf]
    %v69 = vld [vmem:[#allocation6 + $0x2c] sm:$0xf]
    %v70 = vld [vmem:[#allocation6 + $0x30] sm:$0xf]
    %v71 = vld [vmem:[#allocation6 + $0x34] sm:$0xf]
    %v72 = vld [vmem:[#allocation6 + $0x38] sm:$0xf]
    %v73 = vld [vmem:[#allocation6 + $0x3c] sm:$0xf]
    %v90 = vunpack.c.l.b16 %v58
    %v91 = vunpack.c.l.b16 %v59
    %v92 = vunpack.c.l.b16 %v60
    %v93 = vunpack.c.l.b16 %v61
    %v94 = vunpack.c.l.b16 %v62
    %v95 = vunpack.c.l.b16 %v63
    %v96 = vunpack.c.l.b16 %v64
    %v97 = vunpack.c.l.b16 %v65
    %v98 = vunpack.c.l.b16 %v66
    %v99 = vunpack.c.l.b16 %v67
    %v100 = vunpack.c.l.b16 %v68
    %v101 = vunpack.c.l.b16 %v69
    %v102 = vunpack.c.l.b16 %v70
    %v103 = vunpack.c.l.b16 %v71
    %v104 = vunpack.c.l.b16 %v72
    %v105 = vunpack.c.l.b16 %v73
    %v106 = vpack.c.b16 %v91, %v90
    %v107 = vpack.c.b16 %v93, %v92
    %v108 = vpack.c.b16 %v95, %v94
    %v109 = vpack.c.b16 %v97, %v96
    %v110 = vpack.c.b16 %v99, %v98
    %v111 = vpack.c.b16 %v101, %v100
    %v112 = vpack.c.b16 %v103, %v102
    %v113 = vpack.c.b16 %v105, %v104
    %122 = vmatpush.bf16.msra.mxu0 %v113
    %123 = vmatpush.bf16.msra.mxu0 %v112
    %124 = vmatpush.bf16.msra.mxu0 %v111
    %125 = vmatpush.bf16.msra.mxu0 %v110
    %126 = vmatpush.bf16.msra.mxu0 %v109
    %127 = vmatpush.bf16.msra.mxu0 %v108
    %128 = vmatpush.bf16.msra.mxu0 %v107
    %129 = vmatpush.bf16.msra.mxu0 %v106
    %130 = vmatmul.bf16.gmra.mxu0 %v57
    %v131 = vpop.f32.mrf.mxu0
    %v132 = vadd.f32 0.0, %v131
    %v133 = vpop.f32.mrf.mxu0
    %134 = vdwg.mxu0
    %v135 = vadd.f32 %v53, %v132
    %136 = vst [vmem:[#allocation2] sm:$0xff] %v135
    // Predicated region
    $region26: #{tpu_custom_call.1} parent=1 // pred_check
      %p137 = pneg %p48
    $region27: #{tpu_custom_call.1} parent=1 // pred_check_branch
      %139 = sbr.rel (%p137) target = $region29
    $region28: #{tpu_custom_call.1} parent=1 // pred_region
      %v140 = vld [vmem:[#allocation2] sm:$0xff]
      %v141 = vld [vmem:[%s2] sm:$0x1]
      %v143 = vperm.slane %v141, 0
      %v145 = vadd.f32 %v140, %v143
      %v146 = vmax.f32 %v145, 0.0
      %v147 = vpack.c.bf16 %v146, %v146
      %148 = vst [vmem:[#allocation8] sm:$0xf] %v147
      %v149 = vunpack.c.l.bf16 %v147
      %v150 = vrot.slane %v149, 4
      %v151 = vadd.f32 %v149, %v150
      %v152 = vrot.slane %v151, 2
      %v153 = vadd.f32 %v151, %v152
      %v154 = vrot.slane %v153, 1
      %v155 = vadd.f32 %v153, %v154
      %v156 = vmul.f32 %v149, %v149
      %v157 = vrot.slane %v156, 4
      %v158 = vadd.f32 %v156, %v157
      %v159 = vrot.slane %v158, 2
      %v160 = vadd.f32 %v158, %v159
      %v161 = vrot.slane %v160, 1
      %v162 = vadd.f32 %v160, %v161
      %vm163 = vcmask 1040384
      %v164 = vsel %vm163, %v155, %v162
      %165 = vst [vmem:[#allocation9] sm:$0x3] %v164
    $region29: #{tpu_custom_call.1} parent=1 // pred_fallthru
      _
    // Predicated region
    $region30: #{tpu_custom_call.1} parent=1 // pred_check
      _
    $region31: #{tpu_custom_call.1} parent=1 // pred_check_branch
      %167 = sbr.rel (0) target = $region33
    $region32: #{tpu_custom_call.1} parent=1 // pred_region
      %169 = vsyncadd [#allocation5], 0
      %s171 = sshll.u32 [#allocation8], 4
      %s172 = int_to_ptr.vmem [resolvable:$true] %s171
      %s173 = sshll.u32 %s3, 4
      %s174 = int_to_ptr.hbm [resolvable:$true] %s173
      %176 = dma.vmem_to_hbm [thread:$0]  %s172, 64, %s174, [#allocation5]
    $region33: #{tpu_custom_call.1} parent=1 // pred_fallthru
      _
    // Predicated region
    $region34: #{tpu_custom_call.1} parent=1 // pred_check
      _
    $region35: #{tpu_custom_call.1} parent=1 // pred_check_branch
      %178 = sbr.rel (0) target = $region37
    $region36: #{tpu_custom_call.1} parent=1 // pred_region
      %180 = vsyncadd [#allocation10], 0
      %s182 = sshll.u32 [#allocation9], 4
      %s183 = int_to_ptr.vmem [resolvable:$true] %s182
      %s184 = sshll.u32 %s4, 4
      %s185 = int_to_ptr.hbm [resolvable:$true] %s184
      %187 = dma.vmem_to_hbm [thread:$0]  %s183, 32, %s185, [#allocation10]
    $region37: #{tpu_custom_call.1} parent=1 // pred_fallthru
      _
    // Predicated region
    $region38: #{tpu_custom_call.1} parent=1 // pred_check
      _
    $region39: #{tpu_custom_call.1} parent=1 // pred_check_branch
      %189 = sbr.rel (0) target = $region41
    $region40: #{tpu_custom_call.1} parent=1 // pred_region
      %191 = dma.done [#allocation5], 64
    $region41: #{tpu_custom_call.1} parent=1 // pred_fallthru
      _
    // Predicated region
    $region42: #{tpu_custom_call.1} parent=1 // pred_check
      _
    $region43: #{tpu_custom_call.1} parent=1 // pred_check_branch
      %193 = sbr.rel (0) target = $region45
    $region44: #{tpu_custom_call.1} parent=1 // pred_region
      %195 = dma.done [#allocation10], 32
    $region45: #{tpu_custom_call.1} parent=1 // pred_fallthru
      _
    %196 = vsyncpa [#allocation4], 1
    %197 = vsyncpa [#allocation7], 1
    %198 = vsyncpa [#allocation5], 1
    %199 = vsyncpa [#allocation10], 1

</llo_original>
